<compile_context>
chip_gen: v6e
topology: v6e:2x2x1
jax: 0.10.0
libtpu: 0.0.40
codegen_flags: <defaults>
</compile_context>

<pallas_src>
import jax
import jax.numpy as jnp
from jax.experimental import pallas as pl
from jax.experimental.pallas import tpu as pltpu

EPS = 1e-5
KNBR = 9        # 3x3 graph-conv neighborhood
KOFF = 16       # offsets padded to 16 int32 entries for a cleaner DMA


def _round_up(v, m):
    return ((v + m - 1) // m) * m


# ----------------------- kernel 1: conv1 + bn1 + relu ---------------------- #

def _stage1_kernel(x_ref, w1_ref, b1_ref, y_ref):
    # x_ref: (1, TL, Cin) f32, w1_ref: (Cin, Wp) bf16, b1_ref: (1, Wp) f32
    xb = x_ref[0].astype(jnp.bfloat16)                                 # (TL, Cin)
    y = jnp.dot(xb, w1_ref[...], preferred_element_type=jnp.float32)  # (TL, Wp)
    y_ref[0] = jnp.maximum(y + b1_ref[...], 0.0).astype(jnp.bfloat16)


# ---- kernel 2: graph gather + conv2+bn2+relu + conv3+bn3 + add + relu ----- #

def _make_stage2_kernel(L, TL, WIN, PAD, Wp):
    """Closure over static sizes.  Ref layout:
       off_ref : (1, TL, 16)    int32  neighbor indices, -1 = zero padding
       y_ref   : (1, L,  Wp)    bf16   stage-1 activations (resident per batch)
       x_ref   : (1, TL, Cout)  f32    identity tile
       w2_ref  : (9*Wp, Wp)     bf16   (bn2 scale folded in)
       b2_ref  : (1, Wp)        f32
       w3_ref  : (Wp, Cout)     bf16   (bn3 scale folded in)
       b3_ref  : (1, Cout)      f32
       o_ref   : (1, TL, Cout)
    """
    banded = WIN < L

    def kernel(off_ref, y_ref, x_ref, w2_ref, b2_ref, w3_ref, b3_ref, o_ref):
        if banded:
            # Selection window [ws, ws+WIN) covers every neighbor of this tile
            # because WIN >= TL + 2*band (band derived from the offsets).
            start = pl.program_id(1) * TL
            ws = jnp.clip(start - PAD // 2, 0, L - WIN)
            ws = pl.multiple_of(ws, 8)
            y_win = y_ref[0, pl.ds(ws, WIN), :]                        # (WIN, Wp)
        else:
            ws = 0
            y_win = y_ref[0]                                           # (L, Wp)

        off = off_ref[0]                                               # (TL, 16)
        col = jax.lax.broadcasted_iota(jnp.int32, (TL, WIN), 1) + ws   # (TL, WIN)

        # Graph gather: 9 one-hot MXU matmuls.  offset == -1 (or out of the
        # band) matches no column -> zero row ('zeros' padding for free).
        # Selectors are built directly as bf16 (no f32 intermediates).
        chunks = []
        for k in range(KNBR):
            sel = (off[:, k:k + 1] == col).astype(jnp.bfloat16)        # (TL, WIN)
            gk = jnp.dot(sel, y_win, preferred_element_type=jnp.float32)
            chunks.append(gk.astype(jnp.bfloat16))     # exact y values (lossless)
        g = jnp.concatenate(chunks, axis=-1)                           # (TL, 9*Wp)

        # conv2 + bn2 + relu: one deep K = 9*Wp MXU pass (no acc-add chain).
        y2 = jnp.maximum(
            jnp.dot(g, w2_ref[...], preferred_element_type=jnp.float32)
            + b2_ref[...], 0.0)

        # conv3 + bn3 + identity add + relu.
        y3 = jnp.dot(y2.astype(jnp.bfloat16), w3_ref[...],
                     preferred_element_type=jnp.float32) + b3_ref[...]
        o_ref[0] = jnp.maximum(y3 + x_ref[0], 0.0).astype(o_ref.dtype)

    return kernel


# ----------------------------- host-side helpers --------------------------- #

def _pad_width_params(params, W, Wp, Cin, Cout):
    """Zero-pad folded weights from width W to lane-dense Wp (mathematically inert)."""
    w1 = params["w1"].astype(jnp.bfloat16)
    w2 = params["w2"].astype(jnp.bfloat16)
    w3 = params["w3"].astype(jnp.bfloat16)
    b1, b2, b3 = params["b1"], params["b2"], params["b3"]
    if Wp == W:
        return w1, b1, w2, b2, w3, b3
    w1p = jnp.zeros((Cin, Wp), jnp.bfloat16).at[:, :W].set(w1)
    b1p = jnp.zeros((1, Wp), jnp.float32).at[:, :W].set(b1)
    w2p = jnp.zeros((KNBR, Wp, Wp), jnp.bfloat16).at[:, :W, :W].set(
        w2.reshape(KNBR, W, W)).reshape(KNBR * Wp, Wp)
    b2p = jnp.zeros((1, Wp), jnp.float32).at[:, :W].set(b2)
    w3p = jnp.zeros((Wp, Cout), jnp.bfloat16).at[:W, :].set(w3)
    return w1p, b1p, w2p, b2p, w3p, b3


def _vmem_bytes(L, tl, win, Wp, Cin, Cout, out_bytes):
    """Rough stage-2 VMEM working-set estimate (double-buffered tiles + live temps)."""
    blocks = 2 * (L * Wp * 2 + tl * KOFF * 4 + tl * Cin * 4 + tl * Cout * out_bytes)
    weights = 2 * (Cin * Wp * 2 + KNBR * Wp * Wp * 2 + Wp * Cout * 2
                   + (2 * Wp + Cout) * 4)
    interm = tl * win * 8 + tl * KNBR * Wp * 6 + tl * (Wp + Cout) * 8
    return blocks + weights + interm


def _pick_tl(L, band, Wp, Cin, Cout, out_bytes, budget=20 << 20):
    """Largest L-tile (multiple of 16, dividing L) that fits the VMEM budget
    (budget sized for the most constrained chip, v7x)."""
    if L <= 256:
        return L
    cands = [t for t in (2048, 1024, 512, 256, 128, 64, 32, 16)
             if t <= L and L % t == 0]
    if not cands:
        return L   # TODO(synk): ragged-tail tiling for awkward L
    pad = _round_up(2 * band, 16)
    for t in cands:
        win = L if (t == L or t + pad >= L or L % 8 != 0) else t + pad
        if _vmem_bytes(L, t, win, Wp, Cin, Cout, out_bytes) <= budget:
            return t
    return cands[-1]


# ------------------------------- host wrapper ------------------------------ #

def ap_bottleneck_forward(inputs, params, *, tl=None, band=None,
                          out_dtype=jnp.float32):
    """Pallas TPU implementation of APBottleneck.forward (downsample=None).

    inputs = (x, pooling_mask, offsets_first, offsets_others) with
      x:              (N, L, Cin) f32 (PyTorch NCL transposed to NLC)
      offsets_others: (N, L, 9) int32, -1 == 'zeros' padding.
    params: BN-folded bf16 weights w1 (Cin,W), w2 (9W,W), w3 (W,Cout) and f32
      biases b1/b2 (1,W), b3 (1,Cout).
    band: max |offset - position| of the graph; computed from the concrete
      offsets when None (pass it explicitly if calling under jit).
    """
    x, pooling_mask, offsets_first, offsets_others = inputs
    N, L, Cin = x.shape
    W = params["w1"].shape[1]
    Cout = params["w3"].shape[1]
    assert Cin == Cout, "identity add requires inplanes == planes*expansion"
    assert offsets_others.shape == (N, L, KNBR)

    # Lane-dense width padding (zero columns / rows are inert).
    Wp = _round_up(W, 128)
    w1, b1, w2, b2, w3, b3 = _pad_width_params(params, W, Wp, Cin, Cout)

    # Graph locality band for the banded gather window.
    if band is None:
        pos = jnp.arange(L, dtype=jnp.int32)[None, :, None]
        d = jnp.where(offsets_others >= 0,
                      jnp.abs(offsets_others.astype(jnp.int32) - pos), 0)
        band = int(jnp.max(d))

    out_bytes = jnp.dtype(out_dtype).itemsize
    if tl is None:
        tl = _pick_tl(L, band, Wp, Cin, Cout, out_bytes)
    assert L % tl == 0 and (tl == L or tl % 16 == 0)
    n_l = L // tl

    pad = _round_up(2 * band, 16)
    if tl == L or tl + pad >= L or L % 8 != 0:
        win, pad = L, 0                 # full-width selection
    else:
        win = tl + pad                  # banded selection window

    vmem_limit = int(min(64 << 20,
                         max(32 << 20,
                             2 * _vmem_bytes(L, tl, win, Wp, Cin, Cout, out_bytes))))
    cparams = pltpu.CompilerParams(
        dimension_semantics=("parallel", "parallel"),
        vmem_limit_bytes=vmem_limit)

    # ---- stage 1: y = relu(bn1(conv1(x))) -> bf16, lane-dense Wp ----
    y = pl.pallas_call(
        _stage1_kernel,
        out_shape=jax.ShapeDtypeStruct((N, L, Wp), jnp.bfloat16),
        grid_spec=pltpu.PrefetchScalarGridSpec(
            num_scalar_prefetch=0,
            grid=(N, n_l),
            in_specs=[
                pl.BlockSpec((1, tl, Cin), lambda n, l: (n, l, 0)),
                pl.BlockSpec((Cin, Wp), lambda n, l: (0, 0)),
                pl.BlockSpec((1, Wp), lambda n, l: (0, 0)),
            ],
            out_specs=pl.BlockSpec((1, tl, Wp), lambda n, l: (n, l, 0)),
        ),
        compiler_params=cparams,
    )(x, w1, b1)

    # Offsets padded to 16 int32 entries (lane-friendlier DMA rows).
    offs = jnp.pad(offsets_others.astype(jnp.int32),
                   ((0, 0), (0, 0), (0, KOFF - KNBR)), constant_values=-1)

    # ---- stage 2/3: gather + conv2+bn2+relu + conv3+bn3 + identity + relu ----
    kernel2 = _make_stage2_kernel(L, tl, win, pad, Wp)
    out = pl.pallas_call(
        kernel2,
        out_shape=jax.ShapeDtypeStruct((N, L, Cout), out_dtype),
        grid_spec=pltpu.PrefetchScalarGridSpec(
            num_scalar_prefetch=0,
            grid=(N, n_l),
            in_specs=[
                pl.BlockSpec((1, tl, KOFF), lambda n, l: (n, l, 0)),   # offsets
                pl.BlockSpec((1, L, Wp), lambda n, l: (n, 0, 0)),      # y (resident)
                pl.BlockSpec((1, tl, Cin), lambda n, l: (n, l, 0)),    # identity
                pl.BlockSpec((KNBR * Wp, Wp), lambda n, l: (0, 0)),
                pl.BlockSpec((1, Wp), lambda n, l: (0, 0)),
                pl.BlockSpec((Wp, Cout), lambda n, l: (0, 0)),
                pl.BlockSpec((1, Cout), lambda n, l: (0, 0)),
            ],
            out_specs=pl.BlockSpec((1, tl, Cout), lambda n, l: (n, l, 0)),
        ),
        compiler_params=cparams,
    )(offs, y, x, w2, b2, w3, b3)

    return (out, pooling_mask, offsets_first, offsets_others)


# ----------------------------- references (JAX) ---------------------------- #

def _gather_neighbors(y, offsets):
    """Reference gather: y (N,L,C), offsets (N,L,9) int32, -1 -> zeros."""
    safe = jnp.maximum(offsets, 0)
    g = jax.vmap(lambda yi, oi: yi[oi])(y, safe)                      # (N,L,9,C)
    g = jnp.where(offsets[..., None] >= 0, g, jnp.zeros((), g.dtype))
    N, L, K, C = g.shape
    return g.reshape(N, L, K * C)


def _reference_bf16(x, offsets, p):
    """Mirrors the kernel math (folded bf16 weights, f32 accumulate)."""
    xb = x.astype(jnp.bfloat16)
    y = jnp.maximum(jnp.einsum("nlc,cw->nlw", xb, p["w1"],
                               preferred_element_type=jnp.float32) + p["b1"], 0.0)
    g = _gather_neighbors(y.astype(jnp.bfloat16), offsets)
    y2 = jnp.maximum(jnp.einsum("nlk,kw->nlw", g, p["w2"],
                                preferred_element_type=jnp.float32) + p["b2"], 0.0)
    y3 = jnp.einsum("nlw,wc->nlc", y2.astype(jnp.bfloat16), p["w3"],
                    preferred_element_type=jnp.float32) + p["b3"]
    return jnp.maximum(y3 + x, 0.0)


def _reference_f32(x, offsets, r):
    """Full-precision reference of the module math."""
    y = jnp.maximum(jnp.einsum("nlc,cw->nlw", x, r["w1"]) * r["s1"] + r["b1"], 0.0)
    g = _gather_neighbors(y, offsets)
    y2 = jnp.maximum(jnp.einsum("nlk,kw->nlw", g, r["w2"]) * r["s2"] + r["b2"], 0.0)
    y3 = jnp.einsum("nlw,wc->nlc", y2, r["w3"]) * r["s3"] + r["b3"]
    return jnp.maximum(y3 + x, 0.0)


# --------------------------------- driver ---------------------------------- #

def _fold_bn(gamma, beta, mean, var):
    s = gamma / jnp.sqrt(var + EPS)
    b = beta - mean * s
    return s[None, :], b[None, :]


def _bn_params(k, c):
    k1, k2, k3, k4 = jax.random.split(k, 4)
    gamma = 1.0 + 0.1 * jax.random.normal(k1, (c,), jnp.float32)
    beta = 0.1 * jax.random.normal(k2, (c,), jnp.float32)
    mean = 0.1 * jax.random.normal(k3, (c,), jnp.float32)
    var = jnp.abs(jax.random.normal(k4, (c,), jnp.float32)) + 0.5
    return _fold_bn(gamma, beta, mean, var)


def _grid_offsets(H, Wsp):
    """3x3 neighbor offsets over an HxWsp grid flattened to L, -1 = zeros pad."""
    hh, ww = jnp.meshgrid(jnp.arange(H), jnp.arange(Wsp), indexing="ij")
    offs = []
    for dh in (-1, 0, 1):
        for dw in (-1, 0, 1):
            nh, nw = hh + dh, ww + dw
            valid = (nh >= 0) & (nh < H) & (nw >= 0) & (nw < Wsp)
            offs.append(jnp.where(valid, nh * Wsp + nw, -1).reshape(-1))
    return jnp.stack(offs, axis=-1).astype(jnp.int32)                # (L, 9)


def _make_case(key, N, H, Wsp, planes=32, expansion=4):
    width = planes
    inplanes = planes * expansion
    Cout = planes * expansion
    L = H * Wsp
    ks = jax.random.split(key, 7)
    w1 = jax.random.normal(ks[0], (inplanes, width), jnp.float32) * 0.1
    w2 = jax.random.normal(ks[1], (9 * width, width), jnp.float32) * 0.1
    w3 = jax.random.normal(ks[2], (width, Cout), jnp.float32) * 0.1
    s1, b1 = _bn_params(ks[3], width)
    s2, b2 = _bn_params(ks[4], width)
    s3, b3 = _bn_params(ks[5], Cout)
    raw = dict(w1=w1, s1=s1, b1=b1, w2=w2, s2=s2, b2=b2, w3=w3, s3=s3, b3=b3)
    params = dict(w1=(w1 * s1).astype(jnp.bfloat16), b1=b1,
                  w2=(w2 * s2).astype(jnp.bfloat16), b2=b2,
                  w3=(w3 * s3).astype(jnp.bfloat16), b3=b3)
    x = jax.random.normal(ks[6], (N, L, inplanes), jnp.float32)
    offsets = _grid_offsets(H, Wsp)
    offsets_others = jnp.broadcast_to(offsets[None], (N, L, 9))
    offsets_first = offsets_others                                    # passthrough
    pooling_mask = jnp.ones((N, L), jnp.float32)                      # passthrough
    return (x, pooling_mask, offsets_first, offsets_others), params, raw


if __name__ == "__main__":
    # Case 1: small shapes (N=2, L=64, C=128) -- single L-tile, full window.
    inputs, params, raw = _make_case(jax.random.PRNGKey(0), N=2, H=8, Wsp=8)
    out, pm, of, oo = ap_bottleneck_forward(inputs, params)
    out = jax.block_until_ready(out)
    x, _, _, offsets_others = inputs
    assert out.shape == (2, 64, 128)
    ref_b = _reference_bf16(x, offsets_others, params)
    assert jnp.allclose(out, ref_b, atol=5e-3, rtol=5e-3), \
        "mismatch vs bf16-mirroring JAX reference (case 1)"
    ref_f = _reference_f32(x, offsets_others, raw)
    assert jnp.allclose(out, ref_f, atol=0.15, rtol=0.15), \
        "mismatch vs f32 JAX reference (case 1)"

    # Case 2: longer sequence (N=1, L=1024) with tl=128 to exercise the
    # multi-tile path and the banded gather window.
    inputs2, params2, _ = _make_case(jax.random.PRNGKey(1), N=1, H=32, Wsp=32)
    out2, *_ = ap_bottleneck_forward(inputs2, params2, tl=128)
    out2 = jax.block_until_ready(out2)
    x2, _, _, oo2 = inputs2
    assert out2.shape == (1, 1024, 128)
    ref2 = _reference_bf16(x2, oo2, params2)
    assert jnp.allclose(out2, ref2, atol=5e-3, rtol=5e-3), \
        "mismatch vs bf16-mirroring JAX reference (case 2, banded gather)"

    print("KERNEL_OK")
</pallas_src>

<mosaic_0001>
module attributes {stable_mosaic.version = 11 : i64} {
  func.func @_stage1_kernel(%arg0: i32, %arg1: i32, %arg2: memref<1x64x128xf32, #tpu.memory_space<vmem>>, %arg3: memref<128x128xbf16, #tpu.memory_space<vmem>>, %arg4: memref<1x128xf32, #tpu.memory_space<vmem>>, %arg5: memref<1x64x128xbf16, #tpu.memory_space<vmem>>) attributes {dimension_semantics = [#tpu.dimension_semantics<parallel>, #tpu.dimension_semantics<parallel>], iteration_bounds = array<i64: 2, 1>, scalar_prefetch = 0 : i64, scratch_operands = 0 : i64, tpu.core_type = #tpu.core_type<tc>, window_params = [{transform_indices = @transform_0, window_bounds = array<i64: 1, 64, 128>}, {pipeline_mode = #tpu.pipeline_mode<synchronous>, transform_indices = @transform_1, window_bounds = array<i64: 128, 128>}, {pipeline_mode = #tpu.pipeline_mode<synchronous>, transform_indices = @transform_2, window_bounds = array<i64: 1, 128>}, {transform_indices = @transform_3, window_bounds = array<i64: 1, 64, 128>}]} {
    %c0 = arith.constant 0 : index
    %c0_0 = arith.constant 0 : index
    %c0_1 = arith.constant 0 : index
    %0 = vector.load %arg2[%c0, %c0_0, %c0_1] : memref<1x64x128xf32, #tpu.memory_space<vmem>>, vector<1x64x128xf32>
    %1 = vector.shape_cast %0 : vector<1x64x128xf32> to vector<64x128xf32>
    %2 = arith.truncf %1 : vector<64x128xf32> to vector<64x128xbf16>
    %c0_2 = arith.constant 0 : index
    %c0_3 = arith.constant 0 : index
    %3 = vector.load %arg3[%c0_2, %c0_3] : memref<128x128xbf16, #tpu.memory_space<vmem>>, vector<128x128xbf16>
    %cst = arith.constant dense<0.000000e+00> : vector<64x128xf32>
    %4 = tpu.matmul %2, %3, %cst {dimension_numbers = #tpu.dot_dimension_numbers<[1], [0], [0], [1], [0, 0, 1, 1], [], []>} : vector<64x128xbf16>, vector<128x128xbf16>, vector<64x128xf32> -> vector<64x128xf32>
    %c0_4 = arith.constant 0 : index
    %c0_5 = arith.constant 0 : index
    %5 = vector.load %arg4[%c0_4, %c0_5] : memref<1x128xf32, #tpu.memory_space<vmem>>, vector<1x128xf32>
    %6 = vector.broadcast %5 : vector<1x128xf32> to vector<64x128xf32>
    %7 = arith.addf %4, %6 : vector<64x128xf32>
    %cst_6 = arith.constant 0.000000e+00 : f32
    %8 = vector.broadcast %cst_6 : f32 to vector<64x128xf32>
    %9 = arith.maximumf %7, %8 : vector<64x128xf32>
    %10 = arith.truncf %9 : vector<64x128xf32> to vector<64x128xbf16>
    %c0_7 = arith.constant 0 : index
    %c0_8 = arith.constant 0 : index
    %c0_9 = arith.constant 0 : index
    %11 = vector.load %arg5[%c0_7, %c0_8, %c0_9] : memref<1x64x128xbf16, #tpu.memory_space<vmem>>, vector<1x64x128xbf16>
    %12 = vector.shape_cast %11 : vector<1x64x128xbf16> to vector<64x128xbf16>
    %13 = vector.shape_cast %10 : vector<64x128xbf16> to vector<1x64x128xbf16>
    tpu.vector_store %arg5[%c0_7, %c0_8, %c0_9], %13 {strides = array<i32>} : memref<1x64x128xbf16, #tpu.memory_space<vmem>>, vector<1x64x128xbf16>,
    return
  }
  func.func @transform_0(%arg0: i32, %arg1: i32) -> (i32, i32, i32) {
    %c0_i32 = arith.constant 0 : i32
    %c0_i32_0 = arith.constant 0 : i32
    return %arg0, %arg1, %c0_i32 : i32, i32, i32
  }
  func.func @transform_1(%arg0: i32, %arg1: i32) -> (i32, i32) {
    %c0_i32 = arith.constant 0 : i32
    %c0_i32_0 = arith.constant 0 : i32
    %c0_i32_1 = arith.constant 0 : i32
    return %c0_i32, %c0_i32_0 : i32, i32
  }
  func.func @transform_2(%arg0: i32, %arg1: i32) -> (i32, i32) {
    %c0_i32 = arith.constant 0 : i32
    %c0_i32_0 = arith.constant 0 : i32
    %c0_i32_1 = arith.constant 0 : i32
    return %c0_i32, %c0_i32_0 : i32, i32
  }
  func.func @transform_3(%arg0: i32, %arg1: i32) -> (i32, i32, i32) {
    %c0_i32 = arith.constant 0 : i32
    %c0_i32_0 = arith.constant 0 : i32
    return %arg0, %arg1, %c0_i32 : i32, i32, i32
  }
}

</mosaic_0001>

<llo_original>
// kernel: tpu_custom_call.1
$region0: #{tpu_custom_call.1}
  #allocation0 [shape = 'u32[]', space=smem, size = 0x4, offset = 0x4, fixed_abs, tag = 'smem constant byte address 0x4 - core index']
  #allocation1 [shape = 'u32[144,128]{1,0:T(1,128)}', space=vmem, size = 0x12000, scoped, tag = 'internal scratch']
  %s0 = inlined_call_operand.hbm [shape: f32[2,64,128], index: 0, kind: input, shape index: {}]
  %s1 = inlined_call_operand.hbm [shape: bf16[128,128], index: 1, kind: input, shape index: {}]
  %s2 = inlined_call_operand.vmem [shape: f32[1,128], index: 2, kind: input, shape index: {}]
  %s3 = inlined_call_operand.hbm [shape: bf16[2,64,128], index: 3, kind: output, shape index: {}]
  %s4 = sld [smem:[#allocation0]]
  $region53: #{tpu_custom_call.1} parent=0
    _
  %s6 = ssub.s32 1, %s4
  %s7 = scalar_select 0, %s6, %s4
  $region1: #{tpu_custom_call.1} parent=0
    #allocation2 [shape = 'u8[65536]{0}', space=vmem, size = 0x10000, scoped, tag = 'input window, operand 0']
    #allocation3 [shape = 's32[2]{0}', space=sflag, size = 0x8, scoped, tag = 'scoped memory for tpu_custom_call.1']
    #allocation4 [shape = 's32[2]{0}', space=sflag, size = 0x8, scoped, tag = 'scoped memory for tpu_custom_call.1']
    #allocation5 [shape = 'u8[32768]{0}', space=vmem, size = 0x8000, scoped, tag = 'input window, operand 1, single buffered']
    #allocation6 [shape = 's32[1]{0}', space=sflag, size = 0x4, scoped, tag = 'scoped memory for tpu_custom_call.1']
    #allocation7 [shape = 'u8[32768]{0}', space=vmem, size = 0x8000, scoped, tag = 'output window, operand 0']
    %8 = vsyncpa [#allocation3], 0
    %s9 = scalar_lea.sflag [#allocation3], 1
    %10 = vsyncpa %s9, 0
    %11 = vsyncpa [#allocation6], 0
    %12 = vsyncpa [#allocation4], 0
    %s13 = scalar_lea.sflag [#allocation4], 1
    %14 = vsyncpa %s13, 0
    loop: start=0, step=1, limit=4
    $region2: #{tpu_custom_call.1} parent=1 // loop_pre_header
      _
    $region3: #{tpu_custom_call.1} parent=1 // loop_header
      %s16 = sphi 0, %s20
      %p17 = scmp.ge.s32.totalorder %s16, 4
      %s23 = sphi 0, %s35
      %s24 = sphi 0, %s31
      %s25 = sphi 0, %s23
      %s26 = sphi 0, %s24
      %s27 = sphi 0, %s25
      %s28 = sphi 0, %s26
      %s40 = sphi 0, %s42
      %s43 = sphi 0, %s40
      %s44 = sphi 0, %s43
      %s60 = sphi 0, %s44
      %s64 = sphi 0, %s64
      %s66 = sphi 0, %s64
      %s67 = sphi 0, %s66
      %s81 = sphi 0, %s67
      %s85 = sphi 0, %s85
      %s87 = sphi 0, %s85
      %s88 = sphi 0, %s87
      %s102 = sphi 0, %s88
      %s110 = sphi 0, %s112
      %s113 = sphi 0, %s110
      %s114 = sphi 0, %s113
      %s130 = sphi 0, %s114
    $region4: #{tpu_custom_call.1} parent=1 // loop_header_branch
      %19 = sbr.rel (%p17) target = $region8
    $region5: #{tpu_custom_call.1} parent=1 // loop_body
      %s21 = ssub.s32 %s16, 1
      %s22 = ssub.s32 %s16, 2
      %s29 = sadd.s32 1, %s24
      %p30 = scmp.ge.s32.totalorder %s29, 1
      %s31 = scalar_select %p30, 0, %s29
      %s32 = sadd.s32 1, %s23
      %s33 = scalar_select %p30, %s32, %s23
      %p34 = scmp.ge.s32.totalorder %s33, 2
      %s35 = scalar_select %p34, 0, %s33
      %s36 = ssub.s32 %s23, %s35
      %s37 = ssub.s32 %s24, %s31
      %s38 = sor.u32 %s36, %s37
      %p39 = scmp.eq.s32.totalorder %s38, 0
      %s41 = sadd.s32 %s40, 1
      %s42 = scalar_select %p39, %s40, %s41
      %p45 = pneg %p39
      %p46 = scmp.eq.s32.totalorder %s16, 1
      %p47 = por %p45, %p46
      %p48 = scmp.ne.s32.totalorder %s40, %s43
      %p49 = scmp.eq.s32.totalorder %s16, 0
      %p50 = por %p48, %p49
      %p51 = scmp.ne.s32.totalorder %s40, %s43
      %p52 = scmp.eq.s32.totalorder %s21, 1
      %p53 = por %p51, %p52
      %p54 = scmp.ne.s32.totalorder %s43, %s44
      %p55 = scmp.eq.s32.totalorder %s21, 0
      %p56 = por %p54, %p55
      %p57 = scmp.ne.s32.totalorder %s43, %s44
      %p58 = scmp.eq.s32.totalorder %s22, 1
      %p59 = por %p57, %p58
      %p61 = scmp.ne.s32.totalorder %s44, %s60
      %p62 = scmp.eq.s32.totalorder %s22, 0
      %p63 = por %p61, %p62
      %s65 = sadd.s32 %s64, 1
      %p68 = scmp.eq.s32.totalorder %s16, 1
      %p69 = scmp.ne.s32.totalorder %s64, %s66
      %p70 = scmp.eq.s32.totalorder %s16, 0
      %p71 = por %p69, %p70
      %p72 = scmp.ne.s32.totalorder %s64, %s66
      %p73 = scmp.eq.s32.totalorder %s21, 1
      %p74 = por %p72, %p73
      %p75 = scmp.ne.s32.totalorder %s66, %s67
      %p76 = scmp.eq.s32.totalorder %s21, 0
      %p77 = por %p75, %p76
      %p78 = scmp.ne.s32.totalorder %s66, %s67
      %p79 = scmp.eq.s32.totalorder %s22, 1
      %p80 = por %p78, %p79
      %p82 = scmp.ne.s32.totalorder %s67, %s81
      %p83 = scmp.eq.s32.totalorder %s22, 0
      %p84 = por %p82, %p83
      %s86 = sadd.s32 %s85, 1
      %p89 = scmp.eq.s32.totalorder %s16, 1
      %p90 = scmp.ne.s32.totalorder %s85, %s87
      %p91 = scmp.eq.s32.totalorder %s16, 0
      %p92 = por %p90, %p91
      %p93 = scmp.ne.s32.totalorder %s85, %s87
      %p94 = scmp.eq.s32.totalorder %s21, 1
      %p95 = por %p93, %p94
      %p96 = scmp.ne.s32.totalorder %s87, %s88
      %p97 = scmp.eq.s32.totalorder %s21, 0
      %p98 = por %p96, %p97
      %p99 = scmp.ne.s32.totalorder %s87, %s88
      %p100 = scmp.eq.s32.totalorder %s22, 1
      %p101 = por %p99, %p100
      %p103 = scmp.ne.s32.totalorder %s88, %s102
      %p104 = scmp.eq.s32.totalorder %s22, 0
      %p105 = por %p103, %p104
      %s106 = ssub.s32 %s23, %s35
      %s107 = ssub.s32 %s24, %s31
      %s108 = sor.u32 %s106, %s107
      %p109 = scmp.eq.s32.totalorder %s108, 0
      %s111 = sadd.s32 %s110, 1
      %s112 = scalar_select %p109, %s110, %s111
      %p115 = pneg %p109
      %p116 = scmp.eq.s32.totalorder %s16, 1
      %p117 = por %p115, %p116
      %p118 = scmp.ne.s32.totalorder %s110, %s113
      %p119 = scmp.eq.s32.totalorder %s16, 0
      %p120 = por %p118, %p119
      %p121 = scmp.ne.s32.totalorder %s110, %s113
      %p122 = scmp.eq.s32.totalorder %s21, 1
      %p123 = por %p121, %p122
      %p124 = scmp.ne.s32.totalorder %s113, %s114
      %p125 = scmp.eq.s32.totalorder %s21, 0
      %p126 = por %p124, %p125
      %p127 = scmp.ne.s32.totalorder %s113, %s114
      %p128 = scmp.eq.s32.totalorder %s22, 1
      %p129 = por %p127, %p128
      %p131 = scmp.ne.s32.totalorder %s114, %s130
      %p132 = scmp.eq.s32.totalorder %s22, 0
      %p133 = por %p131, %p132
      %p134 = scmp.le.s32.totalorder 1, %s16
      %p135 = scmp.lt.s32.totalorder %s16, 3
      %p136 = pnand %p134, %p135
      %p137 = pneg %p136
      // Predicated region
      $region9: #{tpu_custom_call.1} parent=5 // pred_check
        _
      $region10: #{tpu_custom_call.1} parent=5 // pred_check_branch
        %139 = sbr.rel (%p136) target = $region12
      $region11: #{tpu_custom_call.1} parent=5 // pred_region
        %s140 = ssub.s32 %s16, 1
        // Predicated region
        $region13: #{tpu_custom_call.1} parent=11 // pred_check
          %p141 = pneg %p77
        $region14: #{tpu_custom_call.1} parent=11 // pred_check_branch
          %143 = sbr.rel (%p141) target = $region16
        $region15: #{tpu_custom_call.1} parent=11 // pred_region
          %s145 = ssub.s32 1024, 1024
          %146 = vsyncadd [#allocation6], %s145
          %s147 = sshll.u32 [#allocation5], 4
          %s148 = int_to_ptr.vmem [resolvable:$true] %s147
          %153 = dma.hbm_to_vmem [thread:$0]  %s1, 1024, %s148, [#allocation6], 64, 64, 4
        $region16: #{tpu_custom_call.1} parent=11 // pred_fallthru
          _
        // Predicated region
        $region17: #{tpu_custom_call.1} parent=11 // pred_check
          %p154 = pneg %p98
        $region18: #{tpu_custom_call.1} parent=11 // pred_check_branch
          %156 = sbr.rel (%p154) target = $region20
        $region19: #{tpu_custom_call.1} parent=11 // pred_region
          _
        $region20: #{tpu_custom_call.1} parent=11 // pred_fallthru
          _
      $region12: #{tpu_custom_call.1} parent=5 // pred_fallthru
        _
      %p157 = scmp.lt.s32.totalorder %s16, 2
      // Predicated region
      $region21: #{tpu_custom_call.1} parent=5 // pred_check
        %p158 = pneg %p157
      $region22: #{tpu_custom_call.1} parent=5 // pred_check_branch
        %160 = sbr.rel (%p158) target = $region24
      $region23: #{tpu_custom_call.1} parent=5 // pred_region
        // Predicated region
        $region25: #{tpu_custom_call.1} parent=23 // pred_check
          %p161 = pneg %p50
        $region26: #{tpu_custom_call.1} parent=23 // pred_check_branch
          %163 = sbr.rel (%p161) target = $region28
        $region27: #{tpu_custom_call.1} parent=23 // pred_region
          %s164 = sand.u32 %s40, 1
          %s165 = scalar_lea.sflag [#allocation3], %s164
          %s166 = sand.u32 %s40, 1
          %s167 = smul.addr %s166, 64
          %s168 = scalar_lea.vmem [#allocation2], %s167
          %s169 = smul.u32 8, %s24
          %s171 = ssub.s32 1024, 1024
          %172 = vsyncadd %s165, %s171
          %s173 = smul.addr %s23, 8
          %s174 = sadd.s32 %s169, %s173
          %s175 = smul.addr %s174, 128
          %s176 = scalar_lea.hbm %s0, %s175
          %s177 = sshll.u32 %s168, 4
          %s178 = int_to_ptr.vmem [resolvable:$true] %s177
          %183 = dma.hbm_to_vmem [thread:$0]  %s176, 1024, %s178, %s165, 128, 128, 8
        $region28: #{tpu_custom_call.1} parent=23 // pred_fallthru
          _
      $region24: #{tpu_custom_call.1} parent=5 // pred_fallthru
        _
      %p184 = scmp.le.s32.totalorder 1, %s16
      %p185 = scmp.lt.s32.totalorder %s16, 3
      %p186 = pnand %p184, %p185
      %p187 = pneg %p186
      // Predicated region
      $region29: #{tpu_custom_call.1} parent=5 // pred_check
        _
      $region30: #{tpu_custom_call.1} parent=5 // pred_check_branch
        %189 = sbr.rel (%p186) target = $region32
      $region31: #{tpu_custom_call.1} parent=5 // pred_region
        %s190 = ssub.s32 %s16, 1
        %s191 = sand.u32 %s43, 1
        %s192 = scalar_lea.sflag [#allocation3], %s191
        %s193 = sand.u32 %s43, 1
        %s194 = smul.addr %s193, 64
        %s195 = scalar_lea.vmem [#allocation2], %s194
        // Predicated region
        $region33: #{tpu_custom_call.1} parent=31 // pred_check
          %p196 = pneg %p56
        $region34: #{tpu_custom_call.1} parent=31 // pred_check_branch
          %198 = sbr.rel (%p196) target = $region36
        $region35: #{tpu_custom_call.1} parent=31 // pred_region
          %199 = dma.done %s192, 1024
        $region36: #{tpu_custom_call.1} parent=31 // pred_fallthru
          _
        // Predicated region
        $region37: #{tpu_custom_call.1} parent=31 // pred_check
          %p200 = pneg %p77
        $region38: #{tpu_custom_call.1} parent=31 // pred_check_branch
          %202 = sbr.rel (%p200) target = $region40
        $region39: #{tpu_custom_call.1} parent=31 // pred_region
          %203 = dma.done [#allocation6], 1024
        $region40: #{tpu_custom_call.1} parent=31 // pred_fallthru
          _
        %s204 = sand.u32 %s43, 1
        %s205 = scalar_lea.sflag [#allocation3], %s204
        %s206 = sand.u32 %s43, 1
        %s207 = smul.addr %s206, 64
        %s208 = scalar_lea.vmem [#allocation2], %s207
        %p209 = pneg %p56
        %p210 = pneg %p53
        %p211 = pneg %p77
        %p212 = pneg %p74
        %p213 = pneg %p98
        %p214 = pneg %p95
        %p215 = pneg %p126
        %p216 = pneg %p123
        %s217 = sand.u32 %s113, 1
        %s218 = scalar_lea.sflag [#allocation4], %s217
        %s219 = sand.u32 %s113, 1
        %s220 = smul.addr %s219, 32
        %s221 = scalar_lea.vmem [#allocation7], %s220
        %s222 = smul.u32 8, %s26
        %s223 = smul.u32 8, %s26
        %v225 = vld [vmem:[%s195] sm:$0xff]
        %v226 = vld [vmem:[%s195 + $0x8] sm:$0xff]
        %v227 = vld [vmem:[%s195 + $0x10] sm:$0xff]
        %v228 = vld [vmem:[%s195 + $0x18] sm:$0xff]
        %v229 = vld [vmem:[%s195 + $0x20] sm:$0xff]
        %v230 = vld [vmem:[%s195 + $0x28] sm:$0xff]
        %v231 = vld [vmem:[%s195 + $0x30] sm:$0xff]
        %v232 = vld [vmem:[%s195 + $0x38] sm:$0xff]
        %v233 = vpack.c.bf16 %v226, %v225
        %v234 = vpack.c.bf16 %v228, %v227
        %v235 = vpack.c.bf16 %v230, %v229
        %v236 = vpack.c.bf16 %v232, %v231
        %v237 = vld [vmem:[#allocation5] sm:$0xf]
        %v238 = vld [vmem:[#allocation5 + $0x4] sm:$0xf]
        %v239 = vld [vmem:[#allocation5 + $0x8] sm:$0xf]
        %v240 = vld [vmem:[#allocation5 + $0xc] sm:$0xf]
        %v241 = vld [vmem:[#allocation5 + $0x10] sm:$0xf]
        %v242 = vld [vmem:[#allocation5 + $0x14] sm:$0xf]
        %v243 = vld [vmem:[#allocation5 + $0x18] sm:$0xf]
        %v244 = vld [vmem:[#allocation5 + $0x1c] sm:$0xf]
        %v245 = vld [vmem:[#allocation5 + $0x20] sm:$0xf]
        %v246 = vld [vmem:[#allocation5 + $0x24] sm:$0xf]
        %v247 = vld [vmem:[#allocation5 + $0x28] sm:$0xf]
        %v248 = vld [vmem:[#allocation5 + $0x2c] sm:$0xf]
        %v249 = vld [vmem:[#allocation5 + $0x30] sm:$0xf]
        %v250 = vld [vmem:[#allocation5 + $0x34] sm:$0xf]
        %v251 = vld [vmem:[#allocation5 + $0x38] sm:$0xf]
        %v252 = vld [vmem:[#allocation5 + $0x3c] sm:$0xf]
        %v253 = vld [vmem:[%s2] sm:$0x1]
        %v255 = vlaneseq
        %v256 = vshrl.u32 %v255, 7
        %v257 = vsub.s32 0, %v256
        %v258 = vrot.slane %v253, %v257
        %v276 = vunpack.c.l.b16 %v237
        %v277 = vunpack.c.l.b16 %v238
        %v278 = vunpack.c.l.b16 %v239
        %v279 = vunpack.c.l.b16 %v240
        %v280 = vunpack.c.l.b16 %v241
        %v281 = vunpack.c.l.b16 %v242
        %v282 = vunpack.c.l.b16 %v243
        %v283 = vunpack.c.l.b16 %v244
        %v284 = vunpack.c.l.b16 %v245
        %v285 = vunpack.c.l.b16 %v246
        %v286 = vunpack.c.l.b16 %v247
        %v287 = vunpack.c.l.b16 %v248
        %v288 = vunpack.c.l.b16 %v249
        %v289 = vunpack.c.l.b16 %v250
        %v290 = vunpack.c.l.b16 %v251
        %v291 = vunpack.c.l.b16 %v252
        %v292 = vpack.c.b16 %v277, %v276
        %v293 = vpack.c.b16 %v279, %v278
        %v294 = vpack.c.b16 %v281, %v280
        %v295 = vpack.c.b16 %v283, %v282
        %v296 = vpack.c.b16 %v285, %v284
        %v297 = vpack.c.b16 %v287, %v286
        %v298 = vpack.c.b16 %v289, %v288
        %v299 = vpack.c.b16 %v291, %v290
        %308 = vmatprep.subr.bf16.mxu0 0
        %309 = vmatpush1.bf16.msra.mxu0 %v299
        %310 = vmatprep.subr.bf16.mxu0 0
        %311 = vmatpush1.bf16.msra.mxu0 %v298
        %312 = vmatprep.subr.bf16.mxu0 0
        %313 = vmatpush1.bf16.msra.mxu0 %v297
        %314 = vmatprep.subr.bf16.mxu0 0
        %315 = vmatpush1.bf16.msra.mxu0 %v296
        %316 = vmatprep.subr.bf16.mxu0 0
        %317 = vmatpush1.bf16.msra.mxu0 %v295
        %318 = vmatprep.subr.bf16.mxu0 0
        %319 = vmatpush1.bf16.msra.mxu0 %v294
        %320 = vmatprep.subr.bf16.mxu0 0
        %321 = vmatpush1.bf16.msra.mxu0 %v293
        %322 = vmatprep.subr.bf16.mxu0 0
        %323 = vmatpush1.bf16.msra.mxu0 %v292
        %324 = vmatprep.subr.bf16.mxu0 0
        %325 = vmatpush2.bf16.msra.mxu0 0
        %326 = vmatprep.subr.bf16.mxu0 0
        %327 = vmatpush2.bf16.msra.mxu0 0
        %328 = vmatprep.subr.bf16.mxu0 0
        %329 = vmatpush2.bf16.msra.mxu0 0
        %330 = vmatprep.subr.bf16.mxu0 0
        %331 = vmatpush2.bf16.msra.mxu0 0
        %332 = vmatprep.subr.bf16.mxu0 0
        %333 = vmatpush2.bf16.msra.mxu0 0
        %334 = vmatprep.subr.bf16.mxu0 0
        %335 = vmatpush2.bf16.msra.mxu0 0
        %336 = vmatprep.subr.bf16.mxu0 0
        %337 = vmatpush2.bf16.msra.mxu0 0
        %338 = vmatprep.subr.bf16.mxu0 0
        %339 = vmatpush2.bf16.msra.mxu0 0
        %340 = vmatprep.mubr.bf16.mxu0 0
        %341 = vmatmul.mubr.bf16.gmra.mxu0 %v233
        %v342 = vpop.f32.mrf.mxu0
        %v343 = vadd.f32 %v258, %v342
        %v344 = vpop.f32.mrf.mxu0
        %v345 = vpop.f32.mrf.mxu0
        %v346 = vadd.f32 %v258, %v345
        %v347 = vpop.f32.mrf.mxu0
        %348 = vmatprep.mubr.bf16.mxu0 0
        %349 = vmatmul.mubr.bf16.gmra.mxu0 %v234
        %v350 = vpop.f32.mrf.mxu0
        %v351 = vadd.f32 %v258, %v350
        %v352 = vpop.f32.mrf.mxu0
        %v353 = vpop.f32.mrf.mxu0
        %v354 = vadd.f32 %v258, %v353
        %v355 = vpop.f32.mrf.mxu0
        %356 = vmatprep.mubr.bf16.mxu0 0
        %357 = vmatmul.mubr.bf16.gmra.mxu0 %v235
        %v358 = vpop.f32.mrf.mxu0
        %v359 = vadd.f32 %v258, %v358
        %v360 = vpop.f32.mrf.mxu0
        %v361 = vpop.f32.mrf.mxu0
        %v362 = vadd.f32 %v258, %v361
        %v363 = vpop.f32.mrf.mxu0
        %364 = vmatprep.mubr.bf16.mxu0 0
        %365 = vmatmul.mubr.bf16.gmra.mxu0 %v236
        %v366 = vpop.f32.mrf.mxu0
        %v367 = vadd.f32 %v258, %v366
        %v368 = vpop.f32.mrf.mxu0
        %v369 = vpop.f32.mrf.mxu0
        %v370 = vadd.f32 %v258, %v369
        %v371 = vpop.f32.mrf.mxu0
        %372 = vdwg.mxu0
        %v373 = vmax.f32 %v343, 0.0
        %v374 = vmax.f32 %v346, 0.0
        %v375 = vmax.f32 %v351, 0.0
        %v376 = vmax.f32 %v354, 0.0
        %v377 = vmax.f32 %v359, 0.0
        %v378 = vmax.f32 %v362, 0.0
        %v379 = vmax.f32 %v367, 0.0
        %v380 = vmax.f32 %v370, 0.0
        %v381 = vpack.c.bf16 %v374, %v373
        %v382 = vpack.c.bf16 %v376, %v375
        %v383 = vpack.c.bf16 %v378, %v377
        %v384 = vpack.c.bf16 %v380, %v379
        %v389 = vunpack.c.l.b16 %v381
        %v390 = vunpack.c.h.b16 %v381
        %v391 = vunpack.c.l.b16 %v382
        %v392 = vunpack.c.h.b16 %v382
        %v393 = vunpack.c.l.b16 %v383
        %v394 = vunpack.c.h.b16 %v383
        %v395 = vunpack.c.l.b16 %v384
        %v396 = vunpack.c.h.b16 %v384
        %v397 = vpack.c.b16 %v389, %v389
        %v398 = vpack.c.b16 %v390, %v390
        %v399 = vpack.c.b16 %v391, %v391
        %v400 = vpack.c.b16 %v392, %v392
        %v401 = vpack.c.b16 %v393, %v393
        %v402 = vpack.c.b16 %v394, %v394
        %v403 = vpack.c.b16 %v395, %v395
        %v404 = vpack.c.b16 %v396, %v396
        %413 = vst [vmem:[%s221] sm:$0xf] %v397
        %414 = vst [vmem:[%s221 + $0x4] sm:$0xf] %v398
        %415 = vst [vmem:[%s221 + $0x8] sm:$0xf] %v399
        %416 = vst [vmem:[%s221 + $0xc] sm:$0xf] %v400
        %417 = vst [vmem:[%s221 + $0x10] sm:$0xf] %v401
        %418 = vst [vmem:[%s221 + $0x14] sm:$0xf] %v402
        %419 = vst [vmem:[%s221 + $0x18] sm:$0xf] %v403
        %420 = vst [vmem:[%s221 + $0x1c] sm:$0xf] %v404
        %s421 = sand.u32 %s113, 1
        %s422 = scalar_lea.sflag [#allocation4], %s421
        %s423 = sand.u32 %s113, 1
        %s424 = smul.addr %s423, 32
        %s425 = scalar_lea.vmem [#allocation7], %s424
        // Predicated region
        $region41: #{tpu_custom_call.1} parent=31 // pred_check
          %p426 = pneg %p123
        $region42: #{tpu_custom_call.1} parent=31 // pred_check_branch
          %428 = sbr.rel (%p426) target = $region44
        $region43: #{tpu_custom_call.1} parent=31 // pred_region
          %s429 = smul.u32 8, %s26
          %s431 = ssub.s32 512, 512
          %432 = vsyncadd %s422, %s431
          %s433 = smul.addr %s25, 8
          %s434 = sadd.s32 %s429, %s433
          %s435 = smul.addr %s434, 64
          %s436 = scalar_lea.hbm %s3, %s435
          %s437 = sshll.u32 %s425, 4
          %s438 = int_to_ptr.vmem [resolvable:$true] %s437
          %443 = dma.vmem_to_hbm [thread:$0]  %s438, 512, %s436, %s422, 64, 64, 4
        $region44: #{tpu_custom_call.1} parent=31 // pred_fallthru
          _
      $region32: #{tpu_custom_call.1} parent=5 // pred_fallthru
        _
      %p444 = scmp.le.s32.totalorder 2, %s16
      // Predicated region
      $region45: #{tpu_custom_call.1} parent=5 // pred_check
        %p445 = pneg %p444
      $region46: #{tpu_custom_call.1} parent=5 // pred_check_branch
        %447 = sbr.rel (%p445) target = $region48
      $region47: #{tpu_custom_call.1} parent=5 // pred_region
        %s448 = ssub.s32 %s16, 2
        // Predicated region
        $region49: #{tpu_custom_call.1} parent=47 // pred_check
          %p449 = pneg %p129
        $region50: #{tpu_custom_call.1} parent=47 // pred_check_branch
          %451 = sbr.rel (%p449) target = $region52
        $region51: #{tpu_custom_call.1} parent=47 // pred_region
          %s452 = sand.u32 %s114, 1
          %s453 = scalar_lea.sflag [#allocation4], %s452
          %s454 = sand.u32 %s114, 1
          %s455 = smul.addr %s454, 32
          %s456 = scalar_lea.vmem [#allocation7], %s455
          %457 = dma.done %s453, 512
        $region52: #{tpu_custom_call.1} parent=47 // pred_fallthru
          _
      $region48: #{tpu_custom_call.1} parent=5 // pred_fallthru
        _
    $region6: #{tpu_custom_call.1} parent=1 // loop_footer
      %s20 = sadd.s32 1, %s16
    $region7: #{tpu_custom_call.1} parent=1 // loop_footer_branch
      %15 = sbr.rel target = $region3
    $region8: #{tpu_custom_call.1} parent=1 // loop_exit
      _
    %458 = vsyncpa [#allocation3], 1
    %s459 = scalar_lea.sflag [#allocation3], 1
    %460 = vsyncpa %s459, 1
    %461 = vsyncpa [#allocation6], 1
    %462 = vsyncpa [#allocation4], 1
    %s463 = scalar_lea.sflag [#allocation4], 1
    %464 = vsyncpa %s463, 1

</llo_original>
